<compile_context>
chip_gen: v5e
topology: v5e:2x2
jax: 0.10.0
libtpu: 0.0.40
codegen_flags: <defaults>
</compile_context>

<pallas_src>
import functools
import math

import jax
import jax.numpy as jnp
from jax import lax
from jax.experimental import pallas as pl
from jax.experimental.pallas import tpu as pltpu


def _label_smoothing_kernel(tgt_ref, x_ref, out_ref, acc_x_ref, acc_t_ref,
                            cnt_ref, *, pad_idx, smooth_val, confidence,
                            row_const):
    """One grid step: fold a (TN, V) tile of log-probs into lane accumulators."""
    i = pl.program_id(0)

    @pl.when(i == 0)
    def _():
        acc_x_ref[...] = jnp.zeros_like(acc_x_ref)
        acc_t_ref[...] = jnp.zeros_like(acc_t_ref)
        cnt_ref[...] = jnp.zeros_like(cnt_ref)

    x = x_ref[...]                       # (TN, V) float32 log-probabilities
    tgt = tgt_ref[...]                   # (TN, 1) int32 target ids
    tn, v = x.shape

    keep = tgt != pad_idx                                   # (TN, 1) rows to count
    col = lax.broadcasted_iota(jnp.int32, (tn, v), 1)
    is_tgt = col == tgt                                     # (TN, V)

    xk = jnp.where(keep, x, jnp.float32(0.0))               # row-masked x
    xt = jnp.where(is_tgt, xk, jnp.float32(0.0))            # target column only
    cv = keep.astype(jnp.float32)                           # (TN, 1) kept-row count

    # Fold the (TN, V) tiles into (8, V) accumulators with pure VPU adds.
    px = xk[0:8, :]
    pt = xt[0:8, :]
    pc = cv[0:8, :]
    for b in range(1, tn // 8):
        lo, hi = b * 8, (b + 1) * 8
        px = px + xk[lo:hi, :]
        pt = pt + xt[lo:hi, :]
        pc = pc + cv[lo:hi, :]
    acc_x_ref[...] += px
    acc_t_ref[...] += pt
    cnt_ref[...] += pc

    @pl.when(i == pl.num_programs(0) - 1)
    def _():
        acc_x = acc_x_ref[...]
        sum_all = jnp.sum(acc_x)                             # sum over kept rows, all cols
        sum_pad = jnp.sum(acc_x[:, pad_idx:pad_idx + 1])     # kept-row sum of x[:, pad]
        sum_tgt = jnp.sum(acc_t_ref[...])                    # kept-row sum of x[i, tgt_i]
        n_kept = jnp.sum(cnt_ref[...])
        cross = (jnp.float32(smooth_val) * (sum_all - sum_pad)
                 + jnp.float32(confidence - smooth_val) * sum_tgt)
        out_ref[0, 0] = n_kept * jnp.float32(row_const) - cross


def _pick_row_tile(n, v, block_budget_bytes=4 * 1024 * 1024):
    """Largest multiple-of-8 row tile whose f32 x block fits the budget."""
    rows = (block_budget_bytes // (4 * v)) // 8 * 8
    rows = max(8, min(512, rows))
    n8 = -(-n // 8) * 8
    return max(8, min(rows, n8))


def label_smoothing_loss(x, target, *, vocab_size, pad_idx, smoothing,
                         row_tile=None):
    """x: (N, V) float32 log-probs, target: (N,) int class indices."""
    n, v = x.shape
    assert v == vocab_size
    assert vocab_size > 2, "smoothing/(vocab_size - 2) requires vocab_size > 2"
    assert 0 <= pad_idx < vocab_size

    if row_tile is None:
        row_tile = _pick_row_tile(n, v)
    assert row_tile % 8 == 0

    # Pad rows so n % row_tile == 0; padded rows get target == pad_idx and
    # therefore contribute exactly 0 to the loss.
    n_pad = -(-n // row_tile) * row_tile
    x_p = x.astype(jnp.float32)
    tgt = target.astype(jnp.int32)
    if n_pad != n:
        x_p = jnp.pad(x_p, ((0, n_pad - n), (0, 0)))
        tgt = jnp.pad(tgt, (0, n_pad - n), constant_values=pad_idx)
    tgt2d = tgt.reshape(n_pad, 1)

    confidence = 1.0 - smoothing
    smooth_val = smoothing / (vocab_size - 2)
    log_conf = math.log(confidence) if confidence > 0.0 else 0.0
    log_smooth = math.log(smooth_val) if smooth_val > 0.0 else 0.0
    # Per non-pad row: sum(td * log(td)) is a compile-time constant.
    row_const = confidence * log_conf + (vocab_size - 2) * smooth_val * log_smooth

    kernel = functools.partial(
        _label_smoothing_kernel,
        pad_idx=pad_idx, smooth_val=smooth_val, confidence=confidence,
        row_const=row_const,
    )

    out = pl.pallas_call(
        kernel,
        out_shape=jax.ShapeDtypeStruct((1, 1), jnp.float32),
        grid_spec=pltpu.PrefetchScalarGridSpec(
            num_scalar_prefetch=0,
            grid=(n_pad // row_tile,),
            in_specs=[
                pl.BlockSpec((row_tile, 1), lambda i: (i, 0)),   # target ids
                pl.BlockSpec((row_tile, v), lambda i: (i, 0)),   # log-probs
            ],
            out_specs=pl.BlockSpec(memory_space=pltpu.SMEM),     # scalar loss
            scratch_shapes=[
                pltpu.VMEM((8, v), jnp.float32),   # lane sums of row-masked x
                pltpu.VMEM((8, v), jnp.float32),   # lane sums of x at target col
                pltpu.VMEM((8, 1), jnp.float32),   # kept-row count
            ],
        ),
        compiler_params=pltpu.CompilerParams(
            dimension_semantics=("arbitrary",)),
    )(tgt2d, x_p)
    return out[0, 0]


def _reference_loss(x, target, *, vocab_size, pad_idx, smoothing):
    """Pure-JAX reference mirroring the PyTorch forward."""
    confidence = 1.0 - smoothing
    n, v = x.shape
    td = jnp.full((n, v), smoothing / (vocab_size - 2), dtype=jnp.float32)
    td = td.at[jnp.arange(n), target].set(confidence)
    td = td.at[:, pad_idx].set(0.0)
    td = jnp.where((target == pad_idx)[:, None], 0.0, td)
    safe = jnp.where(td > 0, td, 1.0)
    return jnp.sum(jnp.where(td > 0, td * (jnp.log(safe) - x), 0.0))


if __name__ == "__main__":
    vocab_size = 32
    pad_idx = 0
    smoothing = 0.1
    n_tokens = 16

    key = jax.random.PRNGKey(0)
    kx, kt = jax.random.split(key)

    logits = jax.random.normal(kx, (n_tokens, vocab_size), dtype=jnp.float32)
    x = jax.nn.log_softmax(logits, axis=-1)                     # log-probabilities
    target = jax.random.randint(kt, (n_tokens,), 0, vocab_size, dtype=jnp.int32)
    # force a couple of pad targets to exercise the row-masking path
    target = target.at[3].set(pad_idx).at[11].set(pad_idx)

    # row_tile=8 -> 2 grid steps, exercising init / accumulate / finalize.
    loss = label_smoothing_loss(
        x, target, vocab_size=vocab_size, pad_idx=pad_idx, smoothing=smoothing,
        row_tile=8)
    loss = jax.block_until_ready(loss)

    ref = _reference_loss(
        x, target, vocab_size=vocab_size, pad_idx=pad_idx, smoothing=smoothing)
    ref = jax.block_until_ready(ref)

    assert jnp.allclose(loss, ref, rtol=1e-5, atol=1e-5), (loss, ref)
    print("KERNEL_OK")
</pallas_src>

<mosaic_0001>
module attributes {stable_mosaic.version = 11 : i64} {
  func.func @_label_smoothing_kernel(%arg0: i32, %arg1: memref<8x1xi32, #tpu.memory_space<vmem>>, %arg2: memref<8x32xf32, #tpu.memory_space<vmem>>, %arg3: memref<1x1xf32, #tpu.memory_space<smem>>, %arg4: memref<8x32xf32, #tpu.memory_space<vmem>>, %arg5: memref<8x32xf32, #tpu.memory_space<vmem>>, %arg6: memref<8x1xf32, #tpu.memory_space<vmem>>) attributes {dimension_semantics = [#tpu.dimension_semantics<arbitrary>], iteration_bounds = array<i64: 2>, scalar_prefetch = 0 : i64, scratch_operands = 3 : i64, tpu.core_type = #tpu.core_type<tc>, window_params = [{transform_indices = @transform_0, window_bounds = array<i64: 8, 1>}, {transform_indices = @transform_1, window_bounds = array<i64: 8, 32>}, {transform_indices = @transform_2, window_bounds = array<i64: 1, 1>}]} {
    %c0_i32 = arith.constant 0 : i32
    %0 = arith.cmpi eq, %arg0, %c0_i32 : i32
    %1 = arith.extui %0 : i1 to i32
    %c0_i32_0 = arith.constant 0 : i32
    %2 = arith.cmpi ne, %1, %c0_i32_0 : i32
    scf.if %2 {
      %cst_19 = arith.constant 0.000000e+00 : f32
      %30 = vector.broadcast %cst_19 : f32 to vector<8x32xf32>
      %c0_20 = arith.constant 0 : index
      %c0_21 = arith.constant 0 : index
      %31 = vector.load %arg4[%c0_20, %c0_21] : memref<8x32xf32, #tpu.memory_space<vmem>>, vector<8x32xf32>
      tpu.vector_store %arg4[%c0_20, %c0_21], %30 {strides = array<i32>} : memref<8x32xf32, #tpu.memory_space<vmem>>, vector<8x32xf32>,
      %cst_22 = arith.constant 0.000000e+00 : f32
      %32 = vector.broadcast %cst_22 : f32 to vector<8x32xf32>
      %c0_23 = arith.constant 0 : index
      %c0_24 = arith.constant 0 : index
      %33 = vector.load %arg5[%c0_23, %c0_24] : memref<8x32xf32, #tpu.memory_space<vmem>>, vector<8x32xf32>
      tpu.vector_store %arg5[%c0_23, %c0_24], %32 {strides = array<i32>} : memref<8x32xf32, #tpu.memory_space<vmem>>, vector<8x32xf32>,
      %cst_25 = arith.constant 0.000000e+00 : f32
      %34 = vector.broadcast %cst_25 : f32 to vector<8x1xf32>
      %c0_26 = arith.constant 0 : index
      %c0_27 = arith.constant 0 : index
      %35 = vector.load %arg6[%c0_26, %c0_27] : memref<8x1xf32, #tpu.memory_space<vmem>>, vector<8x1xf32>
      tpu.vector_store %arg6[%c0_26, %c0_27], %34 {strides = array<i32>} : memref<8x1xf32, #tpu.memory_space<vmem>>, vector<8x1xf32>,
    } else {
    }
    %c0 = arith.constant 0 : index
    %c0_1 = arith.constant 0 : index
    %3 = vector.load %arg2[%c0, %c0_1] : memref<8x32xf32, #tpu.memory_space<vmem>>, vector<8x32xf32>
    %c0_2 = arith.constant 0 : index
    %c0_3 = arith.constant 0 : index
    %4 = vector.load %arg1[%c0_2, %c0_3] : memref<8x1xi32, #tpu.memory_space<vmem>>, vector<8x1xi32>
    %c0_i32_4 = arith.constant 0 : i32
    %5 = vector.broadcast %c0_i32_4 : i32 to vector<8x1xi32>
    %6 = arith.cmpi ne, %4, %5 : vector<8x1xi32>
    %7 = tpu.iota {dimensions = array<i32: 1>} : vector<8x32xi32>
    %8 = vector.broadcast %4 : vector<8x1xi32> to vector<8x32xi32>
    %9 = arith.cmpi eq, %7, %8 : vector<8x32xi32>
    %cst = arith.constant 0.000000e+00 : f32
    %10 = vector.shape_cast %6 : vector<8x1xi1> to vector<8x1xi1>
    %11 = vector.broadcast %10 : vector<8x1xi1> to vector<8x32xi1>
    %12 = vector.broadcast %cst : f32 to vector<8x32xf32>
    %13 = arith.select %11, %3, %12 : vector<8x32xi1>, vector<8x32xf32>
    %cst_5 = arith.constant 0.000000e+00 : f32
    %14 = vector.broadcast %cst_5 : f32 to vector<8x32xf32>
    %15 = arith.select %9, %13, %14 : vector<8x32xi1>, vector<8x32xf32>
    %16 = arith.extui %6 : vector<8x1xi1> to vector<8x1xi32>
    %17 = arith.sitofp %16 : vector<8x1xi32> to vector<8x1xf32>
    %c0_6 = arith.constant 0 : index
    %c0_7 = arith.constant 0 : index
    %18 = vector.load %arg4[%c0_6, %c0_7] : memref<8x32xf32, #tpu.memory_space<vmem>>, vector<8x32xf32>
    %19 = arith.addf %18, %13 : vector<8x32xf32>
    %c0_8 = arith.constant 0 : index
    %c0_9 = arith.constant 0 : index
    %20 = vector.load %arg4[%c0_8, %c0_9] : memref<8x32xf32, #tpu.memory_space<vmem>>, vector<8x32xf32>
    tpu.vector_store %arg4[%c0_8, %c0_9], %19 {strides = array<i32>} : memref<8x32xf32, #tpu.memory_space<vmem>>, vector<8x32xf32>,
    %c0_10 = arith.constant 0 : index
    %c0_11 = arith.constant 0 : index
    %21 = vector.load %arg5[%c0_10, %c0_11] : memref<8x32xf32, #tpu.memory_space<vmem>>, vector<8x32xf32>
    %22 = arith.addf %21, %15 : vector<8x32xf32>
    %c0_12 = arith.constant 0 : index
    %c0_13 = arith.constant 0 : index
    %23 = vector.load %arg5[%c0_12, %c0_13] : memref<8x32xf32, #tpu.memory_space<vmem>>, vector<8x32xf32>
    tpu.vector_store %arg5[%c0_12, %c0_13], %22 {strides = array<i32>} : memref<8x32xf32, #tpu.memory_space<vmem>>, vector<8x32xf32>,
    %c0_14 = arith.constant 0 : index
    %c0_15 = arith.constant 0 : index
    %24 = vector.load %arg6[%c0_14, %c0_15] : memref<8x1xf32, #tpu.memory_space<vmem>>, vector<8x1xf32>
    %25 = arith.addf %24, %17 : vector<8x1xf32>
    %c0_16 = arith.constant 0 : index
    %c0_17 = arith.constant 0 : index
    %26 = vector.load %arg6[%c0_16, %c0_17] : memref<8x1xf32, #tpu.memory_space<vmem>>, vector<8x1xf32>
    tpu.vector_store %arg6[%c0_16, %c0_17], %25 {strides = array<i32>} : memref<8x1xf32, #tpu.memory_space<vmem>>, vector<8x1xf32>,
    %c1_i32 = arith.constant 1 : i32
    %27 = arith.cmpi eq, %arg0, %c1_i32 : i32
    %28 = arith.extui %27 : i1 to i32
    %c0_i32_18 = arith.constant 0 : i32
    %29 = arith.cmpi ne, %28, %c0_i32_18 : i32
    scf.if %29 {
      %c0_19 = arith.constant 0 : index
      %c0_20 = arith.constant 0 : index
      %30 = vector.load %arg4[%c0_19, %c0_20] : memref<8x32xf32, #tpu.memory_space<vmem>>, vector<8x32xf32>
      %31 = vector.shape_cast %30 : vector<8x32xf32> to vector<1x8x32xf32>
      %cst_21 = arith.constant dense<0.000000e+00> : vector<1xf32>
      %32 = vector.multi_reduction <add>, %31, %cst_21 [1, 2] : vector<1x8x32xf32> to vector<1xf32>
      %33 = vector.shape_cast %32 : vector<1xf32> to vector<1x1x1xf32>
      %34 = vector.extract %33[0, 0, 0] : f32 from vector<1x1x1xf32>
      %35 = vector.extract_strided_slice %30 {offsets = [0, 0], sizes = [8, 1], strides = [1, 1]} : vector<8x32xf32> to vector<8x1xf32>
      %36 = vector.shape_cast %35 : vector<8x1xf32> to vector<1x8x1xf32>
      %cst_22 = arith.constant dense<0.000000e+00> : vector<1xf32>
      %37 = vector.multi_reduction <add>, %36, %cst_22 [1, 2] : vector<1x8x1xf32> to vector<1xf32>
      %38 = vector.shape_cast %37 : vector<1xf32> to vector<1x1x1xf32>
      %39 = vector.extract %38[0, 0, 0] : f32 from vector<1x1x1xf32>
      %c0_23 = arith.constant 0 : index
      %c0_24 = arith.constant 0 : index
      %40 = vector.load %arg5[%c0_23, %c0_24] : memref<8x32xf32, #tpu.memory_space<vmem>>, vector<8x32xf32>
      %41 = vector.shape_cast %40 : vector<8x32xf32> to vector<1x8x32xf32>
      %cst_25 = arith.constant dense<0.000000e+00> : vector<1xf32>
      %42 = vector.multi_reduction <add>, %41, %cst_25 [1, 2] : vector<1x8x32xf32> to vector<1xf32>
      %43 = vector.shape_cast %42 : vector<1xf32> to vector<1x1x1xf32>
      %44 = vector.extract %43[0, 0, 0] : f32 from vector<1x1x1xf32>
      %c0_26 = arith.constant 0 : index
      %c0_27 = arith.constant 0 : index
      %45 = vector.load %arg6[%c0_26, %c0_27] : memref<8x1xf32, #tpu.memory_space<vmem>>, vector<8x1xf32>
      %46 = vector.shape_cast %45 : vector<8x1xf32> to vector<1x8x1xf32>
      %cst_28 = arith.constant dense<0.000000e+00> : vector<1xf32>
      %47 = vector.multi_reduction <add>, %46, %cst_28 [1, 2] : vector<1x8x1xf32> to vector<1xf32>
      %48 = vector.shape_cast %47 : vector<1xf32> to vector<1x1x1xf32>
      %49 = vector.extract %48[0, 0, 0] : f32 from vector<1x1x1xf32>
      %50 = arith.subf %34, %39 : f32
      %cst_29 = arith.constant 0.00333333341 : f32
      %51 = arith.mulf %cst_29, %50 : f32
      %cst_30 = arith.constant 0.896666646 : f32
      %52 = arith.mulf %cst_30, %44 : f32
      %53 = arith.addf %51, %52 : f32
      %cst_31 = arith.constant -0.665202737 : f32
      %54 = arith.mulf %49, %cst_31 : f32
      %55 = arith.subf %54, %53 : f32
      %c0_32 = arith.constant 0 : index
      %c0_33 = arith.constant 0 : index
      %56 = memref.load %arg3[%c0_32, %c0_33] : memref<1x1xf32, #tpu.memory_space<smem>>
      memref.store %55, %arg3[%c0_32, %c0_33] : memref<1x1xf32, #tpu.memory_space<smem>>
    } else {
    }
    return
  }
  func.func @transform_0(%arg0: i32) -> (i32, i32) {
    %c0_i32 = arith.constant 0 : i32
    %c0_i32_0 = arith.constant 0 : i32
    return %arg0, %c0_i32 : i32, i32
  }
  func.func @transform_1(%arg0: i32) -> (i32, i32) {
    %c0_i32 = arith.constant 0 : i32
    %c0_i32_0 = arith.constant 0 : i32
    return %arg0, %c0_i32 : i32, i32
  }
  func.func @transform_2(%arg0: i32) -> (i32, i32) {
    %c0_i32 = arith.constant 0 : i32
    %c0_i32_0 = arith.constant 0 : i32
    %c0_i32_1 = arith.constant 0 : i32
    return %c0_i32, %c0_i32_0 : i32, i32
  }
}

</mosaic_0001>

<llo_original>
// kernel: tpu_custom_call.1
$region0: #{tpu_custom_call.1}
  #allocation0 [shape = 'u32[]', space=smem, size = 0x4, offset = 0x4, fixed_abs, tag = 'smem constant byte address 0x4 - core index']
  #allocation1 [shape = 'u32[72,128]{1,0:T(1,128)}', space=vmem, size = 0x9000, scoped, tag = 'internal scratch']
  #allocation2 [shape = 'f32[8,32]{1,0:T(8,128)}', space=vmem, size = 0x1000, scoped, tag = 'scratch operand']
  #allocation3 [shape = 'f32[8,32]{1,0:T(8,128)}', space=vmem, size = 0x1000, scoped, tag = 'scratch operand']
  #allocation4 [shape = 'f32[8,1]{1,0:T(8,128)}', space=vmem, size = 0x1000, scoped, tag = 'scratch operand']
  %s0 = inlined_call_operand.vmem [shape: s32[16,1], index: 0, kind: input, shape index: {}]
  %s1 = inlined_call_operand.vmem [shape: f32[16,32], index: 1, kind: input, shape index: {}]
  %s2 = inlined_call_operand.hbm [shape: f32[1,1], index: 2, kind: output, shape index: {}]
  %s3 = sld [smem:[#allocation0]]
  $region49: #{tpu_custom_call.1} parent=0
    _
  %s5 = ssub.s32 1, %s3
  %s6 = scalar_select 0, %s5, %s3
  $region1: #{tpu_custom_call.1} parent=0
    #allocation5 [shape = 'u8[512]{0}', space=smem, size = 0x200, scoped, tag = 'output window, operand 0, single buffered']
    #allocation6 [shape = 's32[2]{0}', space=sflag, size = 0x8, scoped, tag = 'scoped memory for tpu_custom_call.1']
    %7 = vsyncpa [#allocation6], 0
    loop: start=0, step=1, limit=4
    $region2: #{tpu_custom_call.1} parent=1 // loop_pre_header
      _
    $region3: #{tpu_custom_call.1} parent=1 // loop_header
      %s9 = sphi 0, %s13
      %p10 = scmp.ge.s32.totalorder %s9, 4
      %s19 = sphi 0, %s21
      %s22 = sphi 0, %s19
      %s23 = sphi 0, %s22
      %s39 = sphi 0, %s23
      %s45 = sphi 0, %s47
      %s48 = sphi 0, %s45
      %s49 = sphi 0, %s48
      %s65 = sphi 0, %s49
      %s69 = sphi 0, %s69
      %s71 = sphi 0, %s69
      %s72 = sphi 0, %s71
      %s86 = sphi 0, %s72
    $region4: #{tpu_custom_call.1} parent=1 // loop_header_branch
      %12 = sbr.rel (%p10) target = $region8
    $region5: #{tpu_custom_call.1} parent=1 // loop_body
      %s14 = ssub.s32 %s9, 1
      %s15 = ssub.s32 %s9, 2
      %s16 = sadd.s32 %s9, 1
      %s17 = ssub.s32 %s9, %s16
      %p18 = scmp.eq.s32.totalorder %s17, 0
      %s20 = sadd.s32 %s19, 1
      %s21 = scalar_select %p18, %s19, %s20
      %p24 = pneg %p18
      %p25 = scmp.eq.s32.totalorder %s9, 1
      %p26 = por %p24, %p25
      %p27 = scmp.ne.s32.totalorder %s19, %s22
      %p28 = scmp.eq.s32.totalorder %s9, 0
      %p29 = por %p27, %p28
      %p30 = scmp.ne.s32.totalorder %s19, %s22
      %p31 = scmp.eq.s32.totalorder %s14, 1
      %p32 = por %p30, %p31
      %p33 = scmp.ne.s32.totalorder %s22, %s23
      %p34 = scmp.eq.s32.totalorder %s14, 0
      %p35 = por %p33, %p34
      %p36 = scmp.ne.s32.totalorder %s22, %s23
      %p37 = scmp.eq.s32.totalorder %s15, 1
      %p38 = por %p36, %p37
      %p40 = scmp.ne.s32.totalorder %s23, %s39
      %p41 = scmp.eq.s32.totalorder %s15, 0
      %p42 = por %p40, %p41
      %s43 = ssub.s32 %s9, %s16
      %p44 = scmp.eq.s32.totalorder %s43, 0
      %s46 = sadd.s32 %s45, 1
      %s47 = scalar_select %p44, %s45, %s46
      %p50 = pneg %p44
      %p51 = scmp.eq.s32.totalorder %s9, 1
      %p52 = por %p50, %p51
      %p53 = scmp.ne.s32.totalorder %s45, %s48
      %p54 = scmp.eq.s32.totalorder %s9, 0
      %p55 = por %p53, %p54
      %p56 = scmp.ne.s32.totalorder %s45, %s48
      %p57 = scmp.eq.s32.totalorder %s14, 1
      %p58 = por %p56, %p57
      %p59 = scmp.ne.s32.totalorder %s48, %s49
      %p60 = scmp.eq.s32.totalorder %s14, 0
      %p61 = por %p59, %p60
      %p62 = scmp.ne.s32.totalorder %s48, %s49
      %p63 = scmp.eq.s32.totalorder %s15, 1
      %p64 = por %p62, %p63
      %p66 = scmp.ne.s32.totalorder %s49, %s65
      %p67 = scmp.eq.s32.totalorder %s15, 0
      %p68 = por %p66, %p67
      %s70 = sadd.s32 %s69, 1
      %p73 = scmp.eq.s32.totalorder %s9, 1
      %p74 = scmp.ne.s32.totalorder %s69, %s71
      %p75 = scmp.eq.s32.totalorder %s9, 0
      %p76 = por %p74, %p75
      %p77 = scmp.ne.s32.totalorder %s69, %s71
      %p78 = scmp.eq.s32.totalorder %s14, 1
      %p79 = por %p77, %p78
      %p80 = scmp.ne.s32.totalorder %s71, %s72
      %p81 = scmp.eq.s32.totalorder %s14, 0
      %p82 = por %p80, %p81
      %p83 = scmp.ne.s32.totalorder %s71, %s72
      %p84 = scmp.eq.s32.totalorder %s15, 1
      %p85 = por %p83, %p84
      %p87 = scmp.ne.s32.totalorder %s72, %s86
      %p88 = scmp.eq.s32.totalorder %s15, 0
      %p89 = por %p87, %p88
      %p90 = scmp.le.s32.totalorder 1, %s9
      %p91 = scmp.lt.s32.totalorder %s9, 3
      %p92 = pnand %p90, %p91
      %p93 = pneg %p92
      // Predicated region
      $region9: #{tpu_custom_call.1} parent=5 // pred_check
        _
      $region10: #{tpu_custom_call.1} parent=5 // pred_check_branch
        %95 = sbr.rel (%p92) target = $region12
      $region11: #{tpu_custom_call.1} parent=5 // pred_region
        %s96 = ssub.s32 %s9, 1
      $region12: #{tpu_custom_call.1} parent=5 // pred_fallthru
        _
      %p97 = scmp.lt.s32.totalorder %s9, 2
      // Predicated region
      $region13: #{tpu_custom_call.1} parent=5 // pred_check
        %p98 = pneg %p97
      $region14: #{tpu_custom_call.1} parent=5 // pred_check_branch
        %100 = sbr.rel (%p98) target = $region16
      $region15: #{tpu_custom_call.1} parent=5 // pred_region
        // Predicated region
        $region17: #{tpu_custom_call.1} parent=15 // pred_check
          %p101 = pneg %p29
        $region18: #{tpu_custom_call.1} parent=15 // pred_check_branch
          %103 = sbr.rel (%p101) target = $region20
        $region19: #{tpu_custom_call.1} parent=15 // pred_region
          %p104 = scmp.lt.s32.totalorder %s9, 1
          %s105 = scalar_select %p104, %s9, 1
          %s106 = smul.addr %s105, 8
          %s107 = scalar_lea.vmem %s0, %s106
        $region20: #{tpu_custom_call.1} parent=15 // pred_fallthru
          _
        // Predicated region
        $region21: #{tpu_custom_call.1} parent=15 // pred_check
          %p108 = pneg %p55
        $region22: #{tpu_custom_call.1} parent=15 // pred_check_branch
          %110 = sbr.rel (%p108) target = $region24
        $region23: #{tpu_custom_call.1} parent=15 // pred_region
          %p111 = scmp.lt.s32.totalorder %s9, 1
          %s112 = scalar_select %p111, %s9, 1
          %s113 = smul.addr %s112, 8
          %s114 = scalar_lea.vmem %s1, %s113
        $region24: #{tpu_custom_call.1} parent=15 // pred_fallthru
          _
      $region16: #{tpu_custom_call.1} parent=5 // pred_fallthru
        _
      %p115 = scmp.le.s32.totalorder 1, %s9
      %p116 = scmp.lt.s32.totalorder %s9, 3
      %p117 = pnand %p115, %p116
      %p118 = pneg %p117
      // Predicated region
      $region25: #{tpu_custom_call.1} parent=5 // pred_check
        _
      $region26: #{tpu_custom_call.1} parent=5 // pred_check_branch
        %120 = sbr.rel (%p117) target = $region28
      $region27: #{tpu_custom_call.1} parent=5 // pred_region
        %s121 = ssub.s32 %s9, 1
        %p122 = scmp.lt.s32.totalorder %s14, 1
        %s123 = scalar_select %p122, %s14, 1
        %s124 = smul.addr %s123, 8
        %s125 = scalar_lea.vmem %s0, %s124
        %p126 = pneg %p35
        %p127 = pneg %p32
        %p128 = scmp.lt.s32.totalorder %s14, 1
        %s129 = scalar_select %p128, %s14, 1
        %s130 = smul.addr %s129, 8
        %s131 = scalar_lea.vmem %s1, %s130
        %p132 = pneg %p61
        %p133 = pneg %p58
        %p134 = pneg %p82
        %p135 = pneg %p79
        %p136 = scmp.lt.s32.totalorder %s14, 1
        %s137 = scalar_select %p136, %s14, 1
        %s138 = smul.addr %s137, 8
        %s139 = scalar_lea.vmem %s0, %s138
        %p140 = scmp.lt.s32.totalorder %s14, 1
        %s141 = scalar_select %p140, %s14, 1
        %s142 = smul.addr %s141, 8
        %s143 = scalar_lea.vmem %s1, %s142
        %p144 = scmp.eq.s32.totalorder %s14, 0
        // Predicated region
        $region29: #{tpu_custom_call.1} parent=27 // pred_check
          %p145 = pneg %p144
        $region30: #{tpu_custom_call.1} parent=27 // pred_check_branch
          %147 = sbr.rel (%p145) target = $region32
        $region31: #{tpu_custom_call.1} parent=27 // pred_region
          %vm148 = vcmask 261120
          %149 = vst.msk [vmem:[#allocation2] sm:$0xff] %vm148, 0.0
          %150 = vst.msk [vmem:[#allocation3] sm:$0xff] %vm148, 0.0
          %vm151 = vcmask 7168
          %152 = vst.msk [vmem:[#allocation4] sm:$0xff] %vm151, 0.0
        $region32: #{tpu_custom_call.1} parent=27 // pred_fallthru
          _
        %v153 = vld [vmem:[%s143] sm:$0xff]
        %v154 = vld [vmem:[%s139] sm:$0xff]
        %vm155 = vcmp.ne.s32.totalorder %v154, 0
        %v156 = vlaneseq
        %v157 = vand.u32 %v156, 127
        %158 = vset.pattern.permute.xlu0 0
        %159 = vperm.xlu0 %158, %v154
        %v160 = vpop.permute.xlu0 %159
        %vm161 = vcmp.eq.s32.totalorder %v157, %v160
        %v162 = vsel %vm155, 1, 0
        %163 = vset.pattern.permute.xlu0 0
        %164 = vperm.xlu0 %163, %v162
        %v165 = vpop.permute.xlu0 %164
        %vm166 = vcmp.eq.s32.totalorder %v165, 1
        %v167 = vsel %vm166, %v153, 0.0
        %v168 = vsel %vm161, %v167, 0.0
        %v169 = vcvt.s32.f32 %v162
        %v170 = vld [vmem:[#allocation2] sm:$0xff]
        %v171 = vadd.f32 %v170, %v167
        %vm172 = vcmask 261120
        %173 = vst.msk [vmem:[#allocation2] sm:$0xff] %vm172, %v171
        %v174 = vld [vmem:[#allocation3] sm:$0xff]
        %v175 = vadd.f32 %v174, %v168
        %176 = vst.msk [vmem:[#allocation3] sm:$0xff] %vm172, %v175
        %v177 = vld [vmem:[#allocation4] sm:$0xff]
        %v178 = vadd.f32 %v177, %v169
        %vm179 = vcmask 7168
        %180 = vst.msk [vmem:[#allocation4] sm:$0xff] %vm179, %v178
        %p181 = scmp.eq.s32.totalorder %s14, 1
        // Predicated region
        $region33: #{tpu_custom_call.1} parent=27 // pred_check
          %p182 = pneg %p181
        $region34: #{tpu_custom_call.1} parent=27 // pred_check_branch
          %184 = sbr.rel (%p182) target = $region36
        $region35: #{tpu_custom_call.1} parent=27 // pred_region
          %v185 = vld [vmem:[#allocation2] sm:$0xff]
          %v186 = vsel %vm172, %v185, 0.0
          %187 = vadd.xlane.f32.xlu0 %v186
          %v188 = vpop.xlane.xlu0 %187
          %v189 = vrot.slane %v188, 4
          %v190 = vadd.f32 %v188, %v189
          %v191 = vrot.slane %v190, 2
          %v192 = vadd.f32 %v190, %v191
          %v193 = vrot.slane %v192, 1
          %v194 = vadd.f32 %v192, %v193
          %s195 = vtos %v194
          %v196 = vsel %vm179, %v185, 0.0
          %197 = vadd.xlane.f32.xlu0 %v196
          %v198 = vpop.xlane.xlu0 %197
          %v199 = vrot.slane %v198, 4
          %v200 = vadd.f32 %v198, %v199
          %v201 = vrot.slane %v200, 2
          %v202 = vadd.f32 %v200, %v201
          %v203 = vrot.slane %v202, 1
          %v204 = vadd.f32 %v202, %v203
          %s205 = vtos %v204
          %v206 = vld [vmem:[#allocation3] sm:$0xff]
          %v207 = vsel %vm172, %v206, 0.0
          %208 = vadd.xlane.f32.xlu0 %v207
          %v209 = vpop.xlane.xlu0 %208
          %v210 = vrot.slane %v209, 4
          %v211 = vadd.f32 %v209, %v210
          %v212 = vrot.slane %v211, 2
          %v213 = vadd.f32 %v211, %v212
          %v214 = vrot.slane %v213, 1
          %v215 = vadd.f32 %v213, %v214
          %s216 = vtos %v215
          %v217 = vld [vmem:[#allocation4] sm:$0xff]
          %v218 = vsel %vm179, %v217, 0.0
          %219 = vadd.xlane.f32.xlu0 %v218
          %v220 = vpop.xlane.xlu0 %219
          %v221 = vrot.slane %v220, 4
          %v222 = vadd.f32 %v220, %v221
          %v223 = vrot.slane %v222, 2
          %v224 = vadd.f32 %v222, %v223
          %v225 = vrot.slane %v224, 1
          %v226 = vadd.f32 %v224, %v225
          %s227 = vtos %v226
          %s228 = ssub.f32 %s195, %s205
          %s229 = smul.f32 %s228, 0.0033333334
          %s230 = smul.f32 %s216, 0.89666665
          %s231 = sadd.f32 %s229, %s230
          %s232 = smul.f32 %s227, -0.66520274
          %s233 = ssub.f32 %s232, %s231
          %s234 = scalar_lea.smem [#allocation5], 0
          %235 = sst [smem:[%s234]] %s233
        $region36: #{tpu_custom_call.1} parent=27 // pred_fallthru
          _
        // Predicated region
        $region37: #{tpu_custom_call.1} parent=27 // pred_check
          %p236 = pneg %p79
        $region38: #{tpu_custom_call.1} parent=27 // pred_check_branch
          %238 = sbr.rel (%p236) target = $region40
        $region39: #{tpu_custom_call.1} parent=27 // pred_region
          %240 = vsyncadd [#allocation6], 0
          %s242 = sshll.u32 %s2, 4
          %s243 = int_to_ptr.hbm [resolvable:$true] %s242
          %245 = dma.smem_to_hbm [#allocation5], 16, %s243, [#allocation6]
        $region40: #{tpu_custom_call.1} parent=27 // pred_fallthru
          _
        // Predicated region
        $region41: #{tpu_custom_call.1} parent=27 // pred_check
          %p246 = pneg %p79
        $region42: #{tpu_custom_call.1} parent=27 // pred_check_branch
          %248 = sbr.rel (%p246) target = $region44
        $region43: #{tpu_custom_call.1} parent=27 // pred_region
          %250 = dma.done [#allocation6], 16
        $region44: #{tpu_custom_call.1} parent=27 // pred_fallthru
          _
        %251 = sfence
      $region28: #{tpu_custom_call.1} parent=5 // pred_fallthru
        _
      %p252 = scmp.le.s32.totalorder 2, %s9
      // Predicated region
      $region45: #{tpu_custom_call.1} parent=5 // pred_check
        %p253 = pneg %p252
      $region46: #{tpu_custom_call.1} parent=5 // pred_check_branch
        %255 = sbr.rel (%p253) target = $region48
      $region47: #{tpu_custom_call.1} parent=5 // pred_region
        %s256 = ssub.s32 %s9, 2
      $region48: #{tpu_custom_call.1} parent=5 // pred_fallthru
        _
    $region6: #{tpu_custom_call.1} parent=1 // loop_footer
      %s13 = sadd.s32 1, %s9
    $region7: #{tpu_custom_call.1} parent=1 // loop_footer_branch
      %8 = sbr.rel target = $region3
    $region8: #{tpu_custom_call.1} parent=1 // loop_exit
      _
    %257 = vsyncpa [#allocation6], 1
    %s258 = scalar_lea.sflag [#allocation6], 1
    %259 = vsyncpa %s258, 1

</llo_original>
